<compile_context>
chip_gen: v6e
topology: v6e:2x2x1
jax: 0.10.0
libtpu: 0.0.40
codegen_flags: <defaults>
</compile_context>

<pallas_src>
import jax
import jax.numpy as jnp
from jax import lax
from jax.experimental import pallas as pl
from jax.experimental.pallas import tpu as pltpu


# ----------------------------- Pallas kernel --------------------------------
def lstm_encoder_kernel(maxlen_ref,                       # SMEM scalar prefetch (1,)
                        x_ref, len_ref, wih_ref, whh_ref, b_ref,
                        wouth_ref, woutc_ref, bout_ref,   # VMEM inputs
                        out_ref,                          # VMEM output
                        xproj_ref):                       # VMEM scratch (T, Bt, 4H) f32
    T, Bt, E = x_ref.shape
    H = whh_ref.shape[0]

    # ---- Hoisted input projection: ONE wide bf16 MXU matmul over all T*Bt
    #      rows (combined bias folded in), stored time-major so every serial
    #      step reads a contiguous (Bt, 4H) tile.
    xw = (jnp.dot(x_ref[...].reshape(T * Bt, E), wih_ref[...],
                  preferred_element_type=jnp.float32)
          + b_ref[...])                                    # (T*Bt, 4H) f32
    xproj_ref[...] = xw.reshape(T, Bt, 4 * H)

    whh = whh_ref[...]            # (H, 4H) bf16, loop-invariant
    lens = len_ref[...]           # (Bt, 1)  int32

    def step(t, carry):
        h_bf, c = carry
        gates = xproj_ref[t] + jnp.dot(h_bf, whh,
                                       preferred_element_type=jnp.float32)
        # Single full-width sigmoid push; the g-gate lanes were pre-scaled by 2
        # in the wrapper, so tanh(z) = 2*sigmoid(2z) - 1 is pure VPU work.
        s = jax.nn.sigmoid(gates)
        i_g = s[:, 0 * H:1 * H]
        f_g = s[:, 1 * H:2 * H]
        g_g = 2.0 * s[:, 2 * H:3 * H] - 1.0
        o_g = s[:, 3 * H:4 * H]

        c_new = f_g * c + i_g * g_g
        h_new = o_g * jnp.tanh(c_new)

        # pack_padded_sequence: state stops updating once t >= length[b].
        mask = t < lens                                    # (Bt, 1) bool
        c = jnp.where(mask, c_new, c)
        h_bf = jnp.where(mask, h_new.astype(jnp.bfloat16), h_bf)
        return h_bf, c

    h0 = jnp.zeros((Bt, H), jnp.bfloat16)
    c0 = jnp.zeros((Bt, H), jnp.float32)
    # Serial recurrence bounded by max(length): dead timesteps are skipped.
    h, c = lax.fori_loop(0, maxlen_ref[0], step, (h0, c0))

    # ---- Concat-free output head: [h, c] @ W_out^T == h @ Wh + c @ Wc.
    out_ref[...] = (jnp.dot(h, wouth_ref[...], preferred_element_type=jnp.float32)
                    + jnp.dot(c.astype(jnp.bfloat16), woutc_ref[...],
                              preferred_element_type=jnp.float32)
                    + bout_ref[...])


# ------------------------------ Wrapper --------------------------------------
def lstm_encoder_forward(input_seq, length, params, *, hidden_size, z_dim):
    """input_seq: (B, T) int32 tokens ; length: (B,) int32 valid lengths."""
    emb_table = params["embedding"]                    # (V, E), pad row zeroed
    w_ih, w_hh = params["w_ih"], params["w_hh"]        # (4H, E), (4H, H)
    b_ih, b_hh = params["b_ih"], params["b_hh"]        # (4H,), (4H,)
    w_out, b_out = params["w_out"], params["b_out"]    # (2Z, 2H), (2Z,)

    B, T = input_seq.shape
    E = emb_table.shape[1]
    H = hidden_size
    Z = z_dim

    # One batch tile per TensorCore: split in two only when the batch is big
    # enough (v7x megacore); one tile keeps the serial chain shortest on 1-TC
    # chips (v5e/v6e) and for small batches.
    n_tiles = 2 if B >= 16 else 1
    B_pad = pl.cdiv(B, 8 * n_tiles) * 8 * n_tiles
    B_tile = B_pad // n_tiles

    tokens = input_seq.astype(jnp.int32)
    length = length.astype(jnp.int32)
    if B_pad != B:
        tokens = jnp.pad(tokens, ((0, B_pad - B), (0, 0)))   # padded rows unused
        length = jnp.pad(length, (0, B_pad - B))              # padded rows: len 0

    # Time-major gather: transpose the tiny int token matrix (not the embedded
    # activations) so the kernel reads contiguous per-step slabs.
    x_tm = emb_table[tokens.T].astype(jnp.bfloat16)           # (T, B_pad, E)
    len2d = length.reshape(B_pad, 1)
    maxlen = jnp.minimum(jnp.max(length), T).astype(jnp.int32).reshape(1)

    # Fold the tanh -> sigmoid rewrite into the weights: scale the g-gate rows
    # by 2 once here (parameter prep) so the kernel does a single full-width
    # sigmoid per step.
    g_scale = jnp.ones((4 * H, 1), jnp.float32).at[2 * H:3 * H, :].set(2.0)
    wih_t = (w_ih * g_scale).T.astype(jnp.bfloat16)           # (E, 4H)
    whh_t = (w_hh * g_scale).T.astype(jnp.bfloat16)           # (H, 4H)
    b_all = ((b_ih + b_hh) * g_scale[:, 0]).reshape(1, 4 * H).astype(jnp.float32)

    # Split output head so no lane-concat is needed in the kernel.
    wout_h = w_out[:, :H].T.astype(jnp.bfloat16)              # (H, 2Z)
    wout_c = w_out[:, H:].T.astype(jnp.bfloat16)              # (H, 2Z)
    bout2d = b_out.reshape(1, 2 * Z).astype(jnp.float32)

    # Explicit VMEM budget for the everything-resident design (capped for v7x).
    vmem_need = (T * B_tile * E * 2                 # x block (bf16)
                 + T * B_tile * 4 * H * 4           # xproj scratch (f32)
                 + (E + H) * 4 * H * 2              # W_ih^T, W_hh^T (bf16)
                 + 2 * H * 2 * Z * 2                # W_out halves (bf16)
                 + 4 * H * 4 + 2 * Z * 4            # biases
                 + B_tile * 4 + B_tile * 2 * Z * 4)  # lengths + output
    vmem_limit = int(min(max(2 * vmem_need, 32 * 2**20), 64 * 2**20))

    grid_spec = pltpu.PrefetchScalarGridSpec(
        num_scalar_prefetch=1,
        grid=(B_pad // B_tile,),
        in_specs=[
            pl.BlockSpec((T, B_tile, E), lambda b, ml: (0, b, 0)),   # x (time-major)
            pl.BlockSpec((B_tile, 1), lambda b, ml: (b, 0)),         # lengths
            pl.BlockSpec((E, 4 * H), lambda b, ml: (0, 0)),          # W_ih^T
            pl.BlockSpec((H, 4 * H), lambda b, ml: (0, 0)),          # W_hh^T
            pl.BlockSpec((1, 4 * H), lambda b, ml: (0, 0)),          # bias
            pl.BlockSpec((H, 2 * Z), lambda b, ml: (0, 0)),          # W_out (h half)
            pl.BlockSpec((H, 2 * Z), lambda b, ml: (0, 0)),          # W_out (c half)
            pl.BlockSpec((1, 2 * Z), lambda b, ml: (0, 0)),          # b_out
        ],
        out_specs=pl.BlockSpec((B_tile, 2 * Z), lambda b, ml: (b, 0)),
        scratch_shapes=[pltpu.VMEM((T, B_tile, 4 * H), jnp.float32)],
    )

    out = pl.pallas_call(
        lstm_encoder_kernel,
        out_shape=jax.ShapeDtypeStruct((B_pad, 2 * Z), jnp.float32),
        grid_spec=grid_spec,
        compiler_params=pltpu.CompilerParams(
            dimension_semantics=("parallel",),
            vmem_limit_bytes=vmem_limit),
    )(maxlen, x_tm, len2d, wih_t, whh_t, b_all, wout_h, wout_c, bout2d)

    mu, logvar = out[:B, :Z], out[:B, Z:]
    return mu, logvar


# ---------------------- Pure-JAX reference (for checking) --------------------
def reference_forward(input_seq, length, params, *, hidden_size, z_dim):
    emb = params["embedding"][input_seq].astype(jnp.float32)   # (B, T, E)
    B, T, _ = emb.shape
    H = hidden_size
    w_ih, w_hh = params["w_ih"], params["w_hh"]
    b = params["b_ih"] + params["b_hh"]

    def step(carry, xs):
        h, c = carry
        x_t, t = xs
        gates = x_t @ w_ih.T + h @ w_hh.T + b
        i_g = jax.nn.sigmoid(gates[:, 0 * H:1 * H])
        f_g = jax.nn.sigmoid(gates[:, 1 * H:2 * H])
        g_g = jnp.tanh(gates[:, 2 * H:3 * H])
        o_g = jax.nn.sigmoid(gates[:, 3 * H:4 * H])
        c_new = f_g * c + i_g * g_g
        h_new = o_g * jnp.tanh(c_new)
        mask = (t < length)[:, None]
        return (jnp.where(mask, h_new, h), jnp.where(mask, c_new, c)), None

    h0 = jnp.zeros((B, H), jnp.float32)
    c0 = jnp.zeros((B, H), jnp.float32)
    (h, c), _ = jax.lax.scan(step, (h0, c0),
                             (jnp.transpose(emb, (1, 0, 2)), jnp.arange(T)))
    hidden = jnp.concatenate([h, c], axis=-1)
    out = hidden @ params["w_out"].T + params["b_out"]
    return out[:, :z_dim], out[:, z_dim:]


# ------------------------------- Main -----------------------------------------
if __name__ == "__main__":
    vocab_size, embed_size, hidden_size, z_dim, pad_idx = 50, 32, 32, 16, 0
    B, T = 4, 8

    key = jax.random.PRNGKey(0)
    k_emb, k_ih, k_hh, k_bih, k_bhh, k_wo, k_bo, k_tok = jax.random.split(key, 8)

    embedding = jax.random.normal(k_emb, (vocab_size, embed_size), jnp.float32) * 0.1
    embedding = embedding.at[pad_idx].set(0.0)  # nn.Embedding padding_idx row
    params = {
        "embedding": embedding,
        "w_ih": jax.random.normal(k_ih, (4 * hidden_size, embed_size), jnp.float32) * 0.1,
        "w_hh": jax.random.normal(k_hh, (4 * hidden_size, hidden_size), jnp.float32) * 0.1,
        "b_ih": jax.random.normal(k_bih, (4 * hidden_size,), jnp.float32) * 0.1,
        "b_hh": jax.random.normal(k_bhh, (4 * hidden_size,), jnp.float32) * 0.1,
        "w_out": jax.random.normal(k_wo, (2 * z_dim, 2 * hidden_size), jnp.float32) * 0.1,
        "b_out": jax.random.normal(k_bo, (2 * z_dim,), jnp.float32) * 0.1,
    }

    # Tokens + (sorted-descending) lengths, padded positions set to pad_idx.
    input_seq = jax.random.randint(k_tok, (B, T), 1, vocab_size, dtype=jnp.int32)
    length = jnp.array([8, 6, 5, 3], dtype=jnp.int32)
    pos = jnp.arange(T)[None, :]
    input_seq = jnp.where(pos < length[:, None], input_seq, pad_idx)

    mu, logvar = lstm_encoder_forward(input_seq, length, params,
                                      hidden_size=hidden_size, z_dim=z_dim)
    jax.block_until_ready((mu, logvar))

    mu_ref, logvar_ref = reference_forward(input_seq, length, params,
                                           hidden_size=hidden_size, z_dim=z_dim)
    assert mu.shape == (B, z_dim) and logvar.shape == (B, z_dim)
    # Tolerance loosened: MXU operands are bf16 (f32 accumulation).
    assert jnp.allclose(mu, mu_ref, atol=2e-2, rtol=2e-2), "mu mismatch vs reference"
    assert jnp.allclose(logvar, logvar_ref, atol=2e-2, rtol=2e-2), "logvar mismatch vs reference"

    print("KERNEL_OK")
</pallas_src>

<mosaic_0001>
module attributes {stable_mosaic.version = 11 : i64} {
  func.func @lstm_encoder_kernel(%arg0: i32, %arg1: memref<1xi32, #tpu.memory_space<smem>>, %arg2: memref<8x8x32xbf16, #tpu.memory_space<vmem>>, %arg3: memref<8x1xi32, #tpu.memory_space<vmem>>, %arg4: memref<32x128xbf16, #tpu.memory_space<vmem>>, %arg5: memref<32x128xbf16, #tpu.memory_space<vmem>>, %arg6: memref<1x128xf32, #tpu.memory_space<vmem>>, %arg7: memref<32x32xbf16, #tpu.memory_space<vmem>>, %arg8: memref<32x32xbf16, #tpu.memory_space<vmem>>, %arg9: memref<1x32xf32, #tpu.memory_space<vmem>>, %arg10: memref<8x32xf32, #tpu.memory_space<vmem>>, %arg11: memref<8x8x128xf32, #tpu.memory_space<vmem>>) attributes {dimension_semantics = [#tpu.dimension_semantics<parallel>], iteration_bounds = array<i64: 1>, scalar_prefetch = 1 : i64, scratch_operands = 1 : i64, tpu.core_type = #tpu.core_type<tc>, window_params = [{transform_indices = @transform_0, window_bounds = array<i64: 8, 8, 32>}, {transform_indices = @transform_1, window_bounds = array<i64: 8, 1>}, {pipeline_mode = #tpu.pipeline_mode<synchronous>, transform_indices = @transform_2, window_bounds = array<i64: 32, 128>}, {pipeline_mode = #tpu.pipeline_mode<synchronous>, transform_indices = @transform_3, window_bounds = array<i64: 32, 128>}, {pipeline_mode = #tpu.pipeline_mode<synchronous>, transform_indices = @transform_4, window_bounds = array<i64: 1, 128>}, {pipeline_mode = #tpu.pipeline_mode<synchronous>, transform_indices = @transform_5, window_bounds = array<i64: 32, 32>}, {pipeline_mode = #tpu.pipeline_mode<synchronous>, transform_indices = @transform_6, window_bounds = array<i64: 32, 32>}, {pipeline_mode = #tpu.pipeline_mode<synchronous>, transform_indices = @transform_7, window_bounds = array<i64: 1, 32>}, {transform_indices = @transform_8, window_bounds = array<i64: 8, 32>}]} {
    %c0 = arith.constant 0 : index
    %c0_0 = arith.constant 0 : index
    %c0_1 = arith.constant 0 : index
    %0 = vector.load %arg2[%c0, %c0_0, %c0_1] : memref<8x8x32xbf16, #tpu.memory_space<vmem>>, vector<8x8x32xbf16>
    %1 = vector.shape_cast %0 : vector<8x8x32xbf16> to vector<64x32xbf16>
    %c0_2 = arith.constant 0 : index
    %c0_3 = arith.constant 0 : index
    %2 = vector.load %arg4[%c0_2, %c0_3] : memref<32x128xbf16, #tpu.memory_space<vmem>>, vector<32x128xbf16>
    %cst = arith.constant dense<0.000000e+00> : vector<64x128xf32>
    %3 = tpu.matmul %1, %2, %cst {dimension_numbers = #tpu.dot_dimension_numbers<[1], [0], [0], [1], [0, 0, 1, 1], [], []>} : vector<64x32xbf16>, vector<32x128xbf16>, vector<64x128xf32> -> vector<64x128xf32>
    %c0_4 = arith.constant 0 : index
    %c0_5 = arith.constant 0 : index
    %4 = vector.load %arg6[%c0_4, %c0_5] : memref<1x128xf32, #tpu.memory_space<vmem>>, vector<1x128xf32>
    %5 = vector.broadcast %4 : vector<1x128xf32> to vector<64x128xf32>
    %6 = arith.addf %3, %5 : vector<64x128xf32>
    %7 = vector.shape_cast %6 : vector<64x128xf32> to vector<8x8x128xf32>
    %c0_6 = arith.constant 0 : index
    %c0_7 = arith.constant 0 : index
    %c0_8 = arith.constant 0 : index
    %8 = vector.load %arg11[%c0_6, %c0_7, %c0_8] : memref<8x8x128xf32, #tpu.memory_space<vmem>>, vector<8x8x128xf32>
    tpu.vector_store %arg11[%c0_6, %c0_7, %c0_8], %7 {strides = array<i32>} : memref<8x8x128xf32, #tpu.memory_space<vmem>>, vector<8x8x128xf32>,
    %c0_9 = arith.constant 0 : index
    %c0_10 = arith.constant 0 : index
    %9 = vector.load %arg5[%c0_9, %c0_10] : memref<32x128xbf16, #tpu.memory_space<vmem>>, vector<32x128xbf16>
    %c0_11 = arith.constant 0 : index
    %c0_12 = arith.constant 0 : index
    %10 = vector.load %arg3[%c0_11, %c0_12] : memref<8x1xi32, #tpu.memory_space<vmem>>, vector<8x1xi32>
    %cst_13 = arith.constant 0.000000e+00 : bf16
    %11 = vector.broadcast %cst_13 : bf16 to vector<8x32xbf16>
    %cst_14 = arith.constant 0.000000e+00 : f32
    %12 = vector.broadcast %cst_14 : f32 to vector<8x32xf32>
    %c0_15 = arith.constant 0 : index
    %13 = memref.load %arg1[%c0_15] : memref<1xi32, #tpu.memory_space<smem>>
    %c0_i32 = arith.constant 0 : i32
    %14 = arith.subi %13, %c0_i32 : i32
    %15 = arith.addi %c0_i32, %14 : i32
    %c1_i32 = arith.constant 1 : i32
    %16:2 = scf.for %arg12 = %c0_i32 to %15 step %c1_i32 iter_args(%arg13 = %11, %arg14 = %12) -> (vector<8x32xbf16>, vector<8x32xf32>)  : i32 {
      %27 = arith.index_cast %arg12 : i32 to index
      %c0_26 = arith.constant 0 : index
      %c0_27 = arith.constant 0 : index
      %28 = vector.load %arg11[%27, %c0_26, %c0_27] : memref<8x8x128xf32, #tpu.memory_space<vmem>>, vector<1x8x128xf32>
      %29 = vector.shape_cast %28 : vector<1x8x128xf32> to vector<8x128xf32>
      %cst_28 = arith.constant dense<0.000000e+00> : vector<8x128xf32>
      %30 = tpu.matmul %arg13, %9, %cst_28 {dimension_numbers = #tpu.dot_dimension_numbers<[1], [0], [0], [1], [0, 0, 1, 1], [], []>} : vector<8x32xbf16>, vector<32x128xbf16>, vector<8x128xf32> -> vector<8x128xf32>
      %31 = arith.addf %29, %30 : vector<8x128xf32>
      %32 = arith.negf %31 : vector<8x128xf32>
      %33 = math.exp %32 : vector<8x128xf32>
      %cst_29 = arith.constant 1.000000e+00 : f32
      %34 = vector.broadcast %cst_29 : f32 to vector<8x128xf32>
      %35 = arith.addf %34, %33 : vector<8x128xf32>
      %36 = arith.divf %34, %35 : vector<8x128xf32>
      %37 = vector.extract_strided_slice %36 {offsets = [0, 0], sizes = [8, 32], strides = [1, 1]} : vector<8x128xf32> to vector<8x32xf32>
      %38 = vector.extract_strided_slice %36 {offsets = [0, 32], sizes = [8, 32], strides = [1, 1]} : vector<8x128xf32> to vector<8x32xf32>
      %39 = vector.extract_strided_slice %36 {offsets = [0, 64], sizes = [8, 32], strides = [1, 1]} : vector<8x128xf32> to vector<8x32xf32>
      %cst_30 = arith.constant 2.000000e+00 : f32
      %40 = vector.broadcast %cst_30 : f32 to vector<8x32xf32>
      %41 = arith.mulf %40, %39 : vector<8x32xf32>
      %cst_31 = arith.constant 1.000000e+00 : f32
      %42 = vector.broadcast %cst_31 : f32 to vector<8x32xf32>
      %43 = arith.subf %41, %42 : vector<8x32xf32>
      %44 = vector.extract_strided_slice %36 {offsets = [0, 96], sizes = [8, 32], strides = [1, 1]} : vector<8x128xf32> to vector<8x32xf32>
      %45 = arith.mulf %38, %arg14 : vector<8x32xf32>
      %46 = arith.mulf %37, %43 : vector<8x32xf32>
      %47 = arith.addf %45, %46 : vector<8x32xf32>
      %48 = math.tanh %47 : vector<8x32xf32>
      %49 = arith.mulf %44, %48 : vector<8x32xf32>
      %50 = vector.broadcast %arg12 : i32 to vector<8x1xi32>
      %51 = arith.cmpi slt, %50, %10 : vector<8x1xi32>
      %52 = vector.shape_cast %51 : vector<8x1xi1> to vector<8x1xi1>
      %53 = vector.broadcast %52 : vector<8x1xi1> to vector<8x32xi1>
      %54 = arith.select %53, %47, %arg14 : vector<8x32xi1>, vector<8x32xf32>
      %55 = arith.truncf %49 : vector<8x32xf32> to vector<8x32xbf16>
      %56 = vector.shape_cast %51 : vector<8x1xi1> to vector<8x1xi1>
      %57 = vector.broadcast %56 : vector<8x1xi1> to vector<8x32xi1>
      %58 = arith.select %57, %55, %arg13 : vector<8x32xi1>, vector<8x32xbf16>
      scf.yield %58, %54 : vector<8x32xbf16>, vector<8x32xf32>
    }
    %c0_16 = arith.constant 0 : index
    %c0_17 = arith.constant 0 : index
    %17 = vector.load %arg7[%c0_16, %c0_17] : memref<32x32xbf16, #tpu.memory_space<vmem>>, vector<32x32xbf16>
    %cst_18 = arith.constant dense<0.000000e+00> : vector<8x32xf32>
    %18 = tpu.matmul %16#0, %17, %cst_18 {dimension_numbers = #tpu.dot_dimension_numbers<[1], [0], [0], [1], [0, 0, 1, 1], [], []>} : vector<8x32xbf16>, vector<32x32xbf16>, vector<8x32xf32> -> vector<8x32xf32>
    %19 = arith.truncf %16#1 : vector<8x32xf32> to vector<8x32xbf16>
    %c0_19 = arith.constant 0 : index
    %c0_20 = arith.constant 0 : index
    %20 = vector.load %arg8[%c0_19, %c0_20] : memref<32x32xbf16, #tpu.memory_space<vmem>>, vector<32x32xbf16>
    %cst_21 = arith.constant dense<0.000000e+00> : vector<8x32xf32>
    %21 = tpu.matmul %19, %20, %cst_21 {dimension_numbers = #tpu.dot_dimension_numbers<[1], [0], [0], [1], [0, 0, 1, 1], [], []>} : vector<8x32xbf16>, vector<32x32xbf16>, vector<8x32xf32> -> vector<8x32xf32>
    %22 = arith.addf %18, %21 : vector<8x32xf32>
    %c0_22 = arith.constant 0 : index
    %c0_23 = arith.constant 0 : index
    %23 = vector.load %arg9[%c0_22, %c0_23] : memref<1x32xf32, #tpu.memory_space<vmem>>, vector<1x32xf32>
    %24 = vector.broadcast %23 : vector<1x32xf32> to vector<8x32xf32>
    %25 = arith.addf %22, %24 : vector<8x32xf32>
    %c0_24 = arith.constant 0 : index
    %c0_25 = arith.constant 0 : index
    %26 = vector.load %arg10[%c0_24, %c0_25] : memref<8x32xf32, #tpu.memory_space<vmem>>, vector<8x32xf32>
    tpu.vector_store %arg10[%c0_24, %c0_25], %25 {strides = array<i32>} : memref<8x32xf32, #tpu.memory_space<vmem>>, vector<8x32xf32>,
    return
  }
  func.func @transform_0(%arg0: i32, %arg1: memref<1xi32, #tpu.memory_space<smem>>) -> (i32, i32, i32) {
    %c0_i32 = arith.constant 0 : i32
    %c0_i32_0 = arith.constant 0 : i32
    %c0_i32_1 = arith.constant 0 : i32
    return %c0_i32, %arg0, %c0_i32_0 : i32, i32, i32
  }
  func.func @transform_1(%arg0: i32, %arg1: memref<1xi32, #tpu.memory_space<smem>>) -> (i32, i32) {
    %c0_i32 = arith.constant 0 : i32
    %c0_i32_0 = arith.constant 0 : i32
    return %arg0, %c0_i32 : i32, i32
  }
  func.func @transform_2(%arg0: i32, %arg1: memref<1xi32, #tpu.memory_space<smem>>) -> (i32, i32) {
    %c0_i32 = arith.constant 0 : i32
    %c0_i32_0 = arith.constant 0 : i32
    %c0_i32_1 = arith.constant 0 : i32
    return %c0_i32, %c0_i32_0 : i32, i32
  }
  func.func @transform_3(%arg0: i32, %arg1: memref<1xi32, #tpu.memory_space<smem>>) -> (i32, i32) {
    %c0_i32 = arith.constant 0 : i32
    %c0_i32_0 = arith.constant 0 : i32
    %c0_i32_1 = arith.constant 0 : i32
    return %c0_i32, %c0_i32_0 : i32, i32
  }
  func.func @transform_4(%arg0: i32, %arg1: memref<1xi32, #tpu.memory_space<smem>>) -> (i32, i32) {
    %c0_i32 = arith.constant 0 : i32
    %c0_i32_0 = arith.constant 0 : i32
    %c0_i32_1 = arith.constant 0 : i32
    return %c0_i32, %c0_i32_0 : i32, i32
  }
  func.func @transform_5(%arg0: i32, %arg1: memref<1xi32, #tpu.memory_space<smem>>) -> (i32, i32) {
    %c0_i32 = arith.constant 0 : i32
    %c0_i32_0 = arith.constant 0 : i32
    %c0_i32_1 = arith.constant 0 : i32
    return %c0_i32, %c0_i32_0 : i32, i32
  }
  func.func @transform_6(%arg0: i32, %arg1: memref<1xi32, #tpu.memory_space<smem>>) -> (i32, i32) {
    %c0_i32 = arith.constant 0 : i32
    %c0_i32_0 = arith.constant 0 : i32
    %c0_i32_1 = arith.constant 0 : i32
    return %c0_i32, %c0_i32_0 : i32, i32
  }
  func.func @transform_7(%arg0: i32, %arg1: memref<1xi32, #tpu.memory_space<smem>>) -> (i32, i32) {
    %c0_i32 = arith.constant 0 : i32
    %c0_i32_0 = arith.constant 0 : i32
    %c0_i32_1 = arith.constant 0 : i32
    return %c0_i32, %c0_i32_0 : i32, i32
  }
  func.func @transform_8(%arg0: i32, %arg1: memref<1xi32, #tpu.memory_space<smem>>) -> (i32, i32) {
    %c0_i32 = arith.constant 0 : i32
    %c0_i32_0 = arith.constant 0 : i32
    return %arg0, %c0_i32 : i32, i32
  }
}

</mosaic_0001>

<llo_original>
// kernel: tpu_custom_call.1
$region0: #{tpu_custom_call.1}
  #allocation0 [shape = 'u32[]', space=smem, size = 0x4, offset = 0x4, fixed_abs, tag = 'smem constant byte address 0x4 - core index']
  #allocation1 [shape = 'u32[144,128]{1,0:T(1,128)}', space=vmem, size = 0x12000, scoped, tag = 'internal scratch']
  #allocation2 [shape = 'f32[8,8,128]{2,1,0:T(8,128)}', space=vmem, size = 0x8000, scoped, tag = 'scratch operand']
  #allocation3 [shape = 's32[1]{0}', space=sflag, size = 0x4, scoped, tag = 'scoped memory for tpu_custom_call.1']
  #allocation4 [shape = 's32[1]{0:T(128)S(6)}', space=smem, size = 0x200, scoped, tag = 'prefetched SMEM operand 0']
  %s0 = inlined_call_operand.<no memory space> [shape: s32[1], index: 0, kind: input, shape index: {}]
  %s1 = inlined_call_operand.hbm [shape: bf16[8,8,32], index: 1, kind: input, shape index: {}]
  %s2 = inlined_call_operand.vmem [shape: s32[8,1], index: 2, kind: input, shape index: {}]
  %s3 = inlined_call_operand.hbm [shape: bf16[32,128], index: 3, kind: input, shape index: {}]
  %s4 = inlined_call_operand.vmem [shape: bf16[32,128], index: 4, kind: input, shape index: {}]
  %s5 = inlined_call_operand.vmem [shape: f32[1,128], index: 5, kind: input, shape index: {}]
  %s6 = inlined_call_operand.hbm [shape: bf16[32,32], index: 6, kind: input, shape index: {}]
  %s7 = inlined_call_operand.hbm [shape: bf16[32,32], index: 7, kind: input, shape index: {}]
  %s8 = inlined_call_operand.vmem [shape: f32[1,32], index: 8, kind: input, shape index: {}]
  %s9 = inlined_call_operand.hbm [shape: f32[8,32], index: 9, kind: output, shape index: {}]
  %s10 = sld [smem:[#allocation0]]
  $region65: #{tpu_custom_call.1} parent=0
    _
  %s12 = ssub.s32 1, %s10
  %s13 = scalar_select 0, %s12, %s10
  %14 = sst [smem:[#allocation4]] %s0
  $region1: #{tpu_custom_call.1} parent=0
    #allocation5 [shape = 'u8[16384]{0}', space=vmem, size = 0x4000, scoped, tag = 'input window, operand 1, single buffered']
    #allocation6 [shape = 's32[1]{0}', space=sflag, size = 0x4, scoped, tag = 'scoped memory for tpu_custom_call.1']
    #allocation7 [shape = 's32[1]{0}', space=sflag, size = 0x4, scoped, tag = 'scoped memory for tpu_custom_call.1']
    #allocation8 [shape = 'u8[8192]{0}', space=vmem, size = 0x2000, scoped, tag = 'input window, operand 3, single buffered']
    #allocation9 [shape = 's32[1]{0}', space=sflag, size = 0x4, scoped, tag = 'scoped memory for tpu_custom_call.1']
    #allocation10 [shape = 'u8[8192]{0}', space=vmem, size = 0x2000, scoped, tag = 'input window, operand 6, single buffered']
    #allocation11 [shape = 'u8[8192]{0}', space=vmem, size = 0x2000, scoped, tag = 'input window, operand 7, single buffered']
    #allocation12 [shape = 's32[1]{0}', space=sflag, size = 0x4, scoped, tag = 'scoped memory for tpu_custom_call.1']
    #allocation13 [shape = 'u8[4096]{0}', space=vmem, size = 0x1000, scoped, tag = 'output window, operand 0, single buffered']
    %15 = vsyncpa [#allocation6], 0
    %16 = vsyncpa [#allocation9], 0
    %17 = vsyncpa [#allocation12], 0
    %18 = vsyncpa [#allocation7], 0
    // Predicated region
    $region2: #{tpu_custom_call.1} parent=1 // pred_check
      _
    $region3: #{tpu_custom_call.1} parent=1 // pred_check_branch
      %20 = sbr.rel (0) target = $region5
    $region4: #{tpu_custom_call.1} parent=1 // pred_region
      %s22 = ssub.s32 512, 512
      %23 = vsyncadd [#allocation6], %s22
      %s24 = sshll.u32 [#allocation5], 4
      %s25 = int_to_ptr.vmem [resolvable:$true] %s24
      %30 = dma.hbm_to_vmem [thread:$0]  %s1, 512, %s25, [#allocation6], 64, 64, 4
    $region5: #{tpu_custom_call.1} parent=1 // pred_fallthru
      _
    // Predicated region
    $region6: #{tpu_custom_call.1} parent=1 // pred_check
      _
    $region7: #{tpu_custom_call.1} parent=1 // pred_check_branch
      %32 = sbr.rel (0) target = $region9
    $region8: #{tpu_custom_call.1} parent=1 // pred_region
      _
    $region9: #{tpu_custom_call.1} parent=1 // pred_fallthru
      _
    // Predicated region
    $region10: #{tpu_custom_call.1} parent=1 // pred_check
      _
    $region11: #{tpu_custom_call.1} parent=1 // pred_check_branch
      %34 = sbr.rel (0) target = $region13
    $region12: #{tpu_custom_call.1} parent=1 // pred_region
      %s36 = ssub.s32 256, 256
      %37 = vsyncadd [#allocation9], %s36
      %s38 = sshll.u32 [#allocation8], 4
      %s39 = int_to_ptr.vmem [resolvable:$true] %s38
      %44 = dma.hbm_to_vmem [thread:$0]  %s3, 256, %s39, [#allocation9], 64, 64, 4
    $region13: #{tpu_custom_call.1} parent=1 // pred_fallthru
      _
    // Predicated region
    $region14: #{tpu_custom_call.1} parent=1 // pred_check
      _
    $region15: #{tpu_custom_call.1} parent=1 // pred_check_branch
      %46 = sbr.rel (0) target = $region17
    $region16: #{tpu_custom_call.1} parent=1 // pred_region
      _
    $region17: #{tpu_custom_call.1} parent=1 // pred_fallthru
      _
    // Predicated region
    $region18: #{tpu_custom_call.1} parent=1 // pred_check
      _
    $region19: #{tpu_custom_call.1} parent=1 // pred_check_branch
      %48 = sbr.rel (0) target = $region21
    $region20: #{tpu_custom_call.1} parent=1 // pred_region
      _
    $region21: #{tpu_custom_call.1} parent=1 // pred_fallthru
      _
    // Predicated region
    $region22: #{tpu_custom_call.1} parent=1 // pred_check
      _
    $region23: #{tpu_custom_call.1} parent=1 // pred_check_branch
      %50 = sbr.rel (0) target = $region25
    $region24: #{tpu_custom_call.1} parent=1 // pred_region
      %s52 = ssub.s32 256, 256
      %53 = vsyncadd [#allocation9], %s52
      %s54 = sshll.u32 [#allocation10], 4
      %s55 = int_to_ptr.vmem [resolvable:$true] %s54
      %60 = dma.hbm_to_vmem [thread:$0]  %s6, 256, %s55, [#allocation9], 64, 64, 4
    $region25: #{tpu_custom_call.1} parent=1 // pred_fallthru
      _
    // Predicated region
    $region26: #{tpu_custom_call.1} parent=1 // pred_check
      _
    $region27: #{tpu_custom_call.1} parent=1 // pred_check_branch
      %62 = sbr.rel (0) target = $region29
    $region28: #{tpu_custom_call.1} parent=1 // pred_region
      %s64 = ssub.s32 256, 256
      %65 = vsyncadd [#allocation12], %s64
      %s66 = sshll.u32 [#allocation11], 4
      %s67 = int_to_ptr.vmem [resolvable:$true] %s66
      %72 = dma.hbm_to_vmem [thread:$0]  %s7, 256, %s67, [#allocation12], 64, 64, 4
    $region29: #{tpu_custom_call.1} parent=1 // pred_fallthru
      _
    // Predicated region
    $region30: #{tpu_custom_call.1} parent=1 // pred_check
      _
    $region31: #{tpu_custom_call.1} parent=1 // pred_check_branch
      %74 = sbr.rel (0) target = $region33
    $region32: #{tpu_custom_call.1} parent=1 // pred_region
      _
    $region33: #{tpu_custom_call.1} parent=1 // pred_fallthru
      _
    // Predicated region
    $region34: #{tpu_custom_call.1} parent=1 // pred_check
      _
    $region35: #{tpu_custom_call.1} parent=1 // pred_check_branch
      %76 = sbr.rel (0) target = $region37
    $region36: #{tpu_custom_call.1} parent=1 // pred_region
      %77 = dma.done [#allocation6], 512
    $region37: #{tpu_custom_call.1} parent=1 // pred_fallthru
      _
    // Predicated region
    $region38: #{tpu_custom_call.1} parent=1 // pred_check
      _
    $region39: #{tpu_custom_call.1} parent=1 // pred_check_branch
      %79 = sbr.rel (0) target = $region41
    $region40: #{tpu_custom_call.1} parent=1 // pred_region
      %80 = dma.done [#allocation9], 256
    $region41: #{tpu_custom_call.1} parent=1 // pred_fallthru
      _
    // Predicated region
    $region42: #{tpu_custom_call.1} parent=1 // pred_check
      _
    $region43: #{tpu_custom_call.1} parent=1 // pred_check_branch
      %82 = sbr.rel (0) target = $region45
    $region44: #{tpu_custom_call.1} parent=1 // pred_region
      %83 = dma.done [#allocation9], 256
    $region45: #{tpu_custom_call.1} parent=1 // pred_fallthru
      _
    // Predicated region
    $region46: #{tpu_custom_call.1} parent=1 // pred_check
      _
    $region47: #{tpu_custom_call.1} parent=1 // pred_check_branch
      %85 = sbr.rel (0) target = $region49
    $region48: #{tpu_custom_call.1} parent=1 // pred_region
      %86 = dma.done [#allocation12], 256
    $region49: #{tpu_custom_call.1} parent=1 // pred_fallthru
      _
    %v88 = vld [vmem:[#allocation5] sm:$0xf]
    %v89 = vld [vmem:[#allocation5 + $0x4] sm:$0xf]
    %v90 = vld [vmem:[#allocation5 + $0x8] sm:$0xf]
    %v91 = vld [vmem:[#allocation5 + $0xc] sm:$0xf]
    %v92 = vld [vmem:[#allocation5 + $0x10] sm:$0xf]
    %v93 = vld [vmem:[#allocation5 + $0x14] sm:$0xf]
    %v94 = vld [vmem:[#allocation5 + $0x18] sm:$0xf]
    %v95 = vld [vmem:[#allocation5 + $0x1c] sm:$0xf]
    %v96 = vld [vmem:[#allocation8] sm:$0xf]
    %v97 = vld [vmem:[#allocation8 + $0x4] sm:$0xf]
    %v98 = vld [vmem:[#allocation8 + $0x8] sm:$0xf]
    %v99 = vld [vmem:[#allocation8 + $0xc] sm:$0xf]
    %v100 = vld [vmem:[%s5] sm:$0x1]
    %v102 = vlaneseq
    %v103 = vshrl.u32 %v102, 7
    %v104 = vsub.s32 0, %v103
    %v105 = vrot.slane %v100, %v104
    %v115 = vunpack.c.l.b16 %v88
    %v116 = vunpack.c.l.b16 %v89
    %v117 = vunpack.c.l.b16 %v90
    %v118 = vunpack.c.l.b16 %v91
    %v119 = vunpack.c.l.b16 %v92
    %v120 = vunpack.c.l.b16 %v93
    %v121 = vunpack.c.l.b16 %v94
    %v122 = vunpack.c.l.b16 %v95
    %v123 = vpack.c.b16 %v116, %v115
    %v124 = vpack.c.b16 %v118, %v117
    %v125 = vpack.c.b16 %v120, %v119
    %v126 = vpack.c.b16 %v122, %v121
    %v131 = vunpack.c.l.b16 %v96
    %v132 = vunpack.c.l.b16 %v97
    %v133 = vunpack.c.l.b16 %v98
    %v134 = vunpack.c.l.b16 %v99
    %v135 = vpack.c.b16 %v132, %v131
    %v136 = vpack.c.b16 %v134, %v133
    %vm139 = vcmask 261120
    %v141 = vsel %vm139, %v123, 0
    %v144 = vsel %vm139, %v124, 0
    %v147 = vsel %vm139, %v125, 0
    %v150 = vsel %vm139, %v126, 0
    %152 = vmatprep.subr.bf16.mxu0 0
    %153 = vmatpush1.bf16.msra.mxu0 0
    %154 = vmatprep.subr.bf16.mxu0 0
    %155 = vmatpush1.bf16.msra.mxu0 0
    %156 = vmatprep.subr.bf16.mxu0 0
    %157 = vmatpush1.bf16.msra.mxu0 0
    %158 = vmatprep.subr.bf16.mxu0 0
    %159 = vmatpush1.bf16.msra.mxu0 0
    %160 = vmatprep.subr.bf16.mxu0 0
    %161 = vmatpush1.bf16.msra.mxu0 0
    %162 = vmatprep.subr.bf16.mxu0 0
    %163 = vmatpush1.bf16.msra.mxu0 0
    %164 = vmatprep.subr.bf16.mxu0 0
    %165 = vmatpush1.bf16.msra.mxu0 %v136
    %166 = vmatprep.subr.bf16.mxu0 0
    %167 = vmatpush1.bf16.msra.mxu0 %v135
    %168 = vmatprep.subr.bf16.mxu0 0
    %169 = vmatpush2.bf16.msra.mxu0 0
    %170 = vmatprep.subr.bf16.mxu0 0
    %171 = vmatpush2.bf16.msra.mxu0 0
    %172 = vmatprep.subr.bf16.mxu0 0
    %173 = vmatpush2.bf16.msra.mxu0 0
    %174 = vmatprep.subr.bf16.mxu0 0
    %175 = vmatpush2.bf16.msra.mxu0 0
    %176 = vmatprep.subr.bf16.mxu0 0
    %177 = vmatpush2.bf16.msra.mxu0 0
    %178 = vmatprep.subr.bf16.mxu0 0
    %179 = vmatpush2.bf16.msra.mxu0 0
    %180 = vmatprep.subr.bf16.mxu0 0
    %181 = vmatpush2.bf16.msra.mxu0 0
    %182 = vmatprep.subr.bf16.mxu0 0
    %183 = vmatpush2.bf16.msra.mxu0 0
    %184 = vmatprep.mubr.bf16.mxu0 0
    %185 = vmatmul.mubr.bf16.gmra.mxu0 %v141
    %v186 = vpop.f32.mrf.mxu0
    %v187 = vadd.f32 %v105, %v186
    %v188 = vpop.f32.mrf.mxu0
    %v189 = vpop.f32.mrf.mxu0
    %v190 = vadd.f32 %v105, %v189
    %v191 = vpop.f32.mrf.mxu0
    %192 = vmatprep.mubr.bf16.mxu0 0
    %193 = vmatmul.mubr.bf16.gmra.mxu0 %v144
    %v194 = vpop.f32.mrf.mxu0
    %v195 = vadd.f32 %v105, %v194
    %v196 = vpop.f32.mrf.mxu0
    %v197 = vpop.f32.mrf.mxu0
    %v198 = vadd.f32 %v105, %v197
    %v199 = vpop.f32.mrf.mxu0
    %200 = vmatprep.mubr.bf16.mxu0 0
    %201 = vmatmul.mubr.bf16.gmra.mxu0 %v147
    %v202 = vpop.f32.mrf.mxu0
    %v203 = vadd.f32 %v105, %v202
    %v204 = vpop.f32.mrf.mxu0
    %v205 = vpop.f32.mrf.mxu0
    %v206 = vadd.f32 %v105, %v205
    %v207 = vpop.f32.mrf.mxu0
    %208 = vmatprep.mubr.bf16.mxu0 0
    %209 = vmatmul.mubr.bf16.gmra.mxu0 %v150
    %v210 = vpop.f32.mrf.mxu0
    %v211 = vadd.f32 %v105, %v210
    %v212 = vpop.f32.mrf.mxu0
    %v213 = vpop.f32.mrf.mxu0
    %v214 = vadd.f32 %v105, %v213
    %v215 = vpop.f32.mrf.mxu0
    %216 = vdwg.mxu0
    %217 = vst [vmem:[#allocation2] sm:$0xff] %v187
    %218 = vst [vmem:[#allocation2 + $0x8] sm:$0xff] %v190
    %219 = vst [vmem:[#allocation2 + $0x10] sm:$0xff] %v195
    %220 = vst [vmem:[#allocation2 + $0x18] sm:$0xff] %v198
    %221 = vst [vmem:[#allocation2 + $0x20] sm:$0xff] %v203
    %222 = vst [vmem:[#allocation2 + $0x28] sm:$0xff] %v206
    %223 = vst [vmem:[#allocation2 + $0x30] sm:$0xff] %v211
    %224 = vst [vmem:[#allocation2 + $0x38] sm:$0xff] %v214
    %v225 = vld [vmem:[%s4] sm:$0xf]
    %v226 = vld [vmem:[%s4 + $0x4] sm:$0xf]
    %v227 = vld [vmem:[%s4 + $0x8] sm:$0xf]
    %v228 = vld [vmem:[%s4 + $0xc] sm:$0xf]
    %v229 = vld [vmem:[%s2] sm:$0xff]
    %s230 = sld [smem:[#allocation4]]
    // While loop
    $region50: #{tpu_custom_call.1} parent=1 // loop_pre_header
      _
    $region51: #{tpu_custom_call.1} parent=1 // loop_header
      %s232 = sphi 0, %s234
      %p233 = scmp.ge.s32.totalorder %s232, %s230
      %v237 = vphi 0, %v336
      %v238 = vphi 0.0, %v333
    $region52: #{tpu_custom_call.1} parent=1 // loop_header_branch
      %236 = sbr.rel (%p233) target = $region56
    $region53: #{tpu_custom_call.1} parent=1 // loop_body
      %s239 = smul.u32 %s232, 8
      %s240 = scalar_lea.vmem [#allocation2], %s239
      %v241 = vld [vmem:[%s240] sm:$0xff]
      %243 = vrot.lane.b32.xlu0 %v237, 32
      %v244 = vpop.permute.xlu0 %243
      %v249 = vunpack.c.l.b16 %v225
      %v250 = vunpack.c.l.b16 %v226
      %v251 = vunpack.c.l.b16 %v227
      %v252 = vunpack.c.l.b16 %v228
      %v253 = vpack.c.b16 %v250, %v249
      %v254 = vpack.c.b16 %v252, %v251
      %v258 = vsel %vm139, %v244, 0
      %260 = vmatprep.subr.bf16.mxu0 0
      %261 = vmatpush1.bf16.msra.mxu0 0
      %262 = vmatprep.subr.bf16.mxu0 0
      %263 = vmatpush1.bf16.msra.mxu0 0
      %264 = vmatprep.subr.bf16.mxu0 0
      %265 = vmatpush1.bf16.msra.mxu0 0
      %266 = vmatprep.subr.bf16.mxu0 0
      %267 = vmatpush1.bf16.msra.mxu0 0
      %268 = vmatprep.subr.bf16.mxu0 0
      %269 = vmatpush1.bf16.msra.mxu0 0
      %270 = vmatprep.subr.bf16.mxu0 0
      %271 = vmatpush1.bf16.msra.mxu0 0
      %272 = vmatprep.subr.bf16.mxu0 0
      %273 = vmatpush1.bf16.msra.mxu0 %v254
      %274 = vmatprep.subr.bf16.mxu0 0
      %275 = vmatpush1.bf16.msra.mxu0 %v253
      %276 = vmatprep.subr.bf16.mxu0 0
      %277 = vmatpush2.bf16.msra.mxu0 0
      %278 = vmatprep.subr.bf16.mxu0 0
      %279 = vmatpush2.bf16.msra.mxu0 0
      %280 = vmatprep.subr.bf16.mxu0 0
      %281 = vmatpush2.bf16.msra.mxu0 0
      %282 = vmatprep.subr.bf16.mxu0 0
      %283 = vmatpush2.bf16.msra.mxu0 0
      %284 = vmatprep.subr.bf16.mxu0 0
      %285 = vmatpush2.bf16.msra.mxu0 0
      %286 = vmatprep.subr.bf16.mxu0 0
      %287 = vmatpush2.bf16.msra.mxu0 0
      %288 = vmatprep.subr.bf16.mxu0 0
      %289 = vmatpush2.bf16.msra.mxu0 0
      %290 = vmatprep.subr.bf16.mxu0 0
      %291 = vmatpush2.bf16.msra.mxu0 0
      %292 = vmatprep.mubr.bf16.mxu0 0
      %293 = vmatmul.mubr.bf16.gmra.mxu0 %v258
      %v294 = vpop.f32.mrf.mxu0
      %v295 = vadd.f32 0.0, %v294
      %v296 = vpop.f32.mrf.mxu0
      %v297 = vpop.f32.mrf.mxu0
      %v298 = vpop.f32.mrf.mxu0
      %299 = vdwg.mxu0
      %v300 = vadd.f32 %v241, %v295
      %v301 = vxor.u32 %v300, 2147483648
      %v302 = vmul.f32 %v301, 1.442695
      %v303 = vpow.pop %v302
      %v304 = vadd.f32 %v303, 1.0
      %v305 = vrcp.pop %v304
      %v306 = vmul.f32 1.0, %v305
      %v307 = vmul.f32 %v306, 2.0
      %v308 = vsub.f32 %v307, 1.0
      %v309 = vmul.f32 %v306, %v238
      %311 = vrot.lane.b32.xlu0 %v308, 64
      %v312 = vpop.permute.xlu0 %311
      %v314 = vmul.f32 %v306, %v312
      %316 = vrot.lane.b32.xlu0 %v314, 32
      %v317 = vpop.permute.xlu0 %316
      %v319 = vadd.f32 %v309, %v317
      %v320 = vtanh.pop %v319
      %322 = vrot.lane.b32.xlu0 %v320, 64
      %v323 = vpop.permute.xlu0 %322
      %v325 = vmul.f32 %v306, %v323
      %v326 = vstv %s232
      %vm327 = vcmp.lt.s32.totalorder %v326, %v229
      %v328 = vsel %vm327, 1, 0
      %329 = vset.pattern.permute.xlu0 0
      %330 = vperm.xlu0 %329, %v328
      %v331 = vpop.permute.xlu0 %330
      %vm332 = vcmp.eq.s32.totalorder %v331, 1
      %v333 = vsel %vm332, %v319, %v238
      %v334 = vpack.c.bf16 %v325, %v325
      %vm335 = vmpackc.low %vm332, %vm332
      %v336 = vsel %vm335, %v334, %v237
    $region54: #{tpu_custom_call.1} parent=1 // loop_footer
      %s234 = sadd.s32 %s232, 1
    $region55: #{tpu_custom_call.1} parent=1 // loop_footer_branch
      %231 = sbr.rel target = $region51
    $region56: #{tpu_custom_call.1} parent=1 // loop_exit
      _
    %v337 = vld [vmem:[#allocation10] sm:$0xf]
    %v338 = vld [vmem:[#allocation10 + $0x4] sm:$0xf]
    %v339 = vld [vmem:[#allocation10 + $0x8] sm:$0xf]
    %v340 = vld [vmem:[#allocation10 + $0xc] sm:$0xf]
    %v341 = vpack.c.bf16 %v238, %v238
    %v342 = vld [vmem:[#allocation11] sm:$0xf]
    %v343 = vld [vmem:[#allocation11 + $0x4] sm:$0xf]
    %v344 = vld [vmem:[#allocation11 + $0x8] sm:$0xf]
    %v345 = vld [vmem:[#allocation11 + $0xc] sm:$0xf]
    %347 = vrot.lane.b32.xlu0 %v341, 96
    %v348 = vpop.permute.xlu0 %347
    %v353 = vunpack.c.l.b16 %v342
    %v354 = vunpack.c.l.b16 %v343
    %v355 = vunpack.c.l.b16 %v344
    %v356 = vunpack.c.l.b16 %v345
    %v357 = vpack.c.b16 %v354, %v353
    %v358 = vpack.c.b16 %v356, %v355
    %v362 = vsel %vm139, %v348, 0
    %364 = vmatprep.subr.bf16.mxu0 0
    %365 = vmatpush1.bf16.msra.mxu0 0
    %366 = vmatprep.subr.bf16.mxu0 0
    %367 = vmatpush1.bf16.msra.mxu0 0
    %368 = vmatprep.subr.bf16.mxu0 0
    %369 = vmatpush1.bf16.msra.mxu0 0
    %370 = vmatprep.subr.bf16.mxu0 0
    %371 = vmatpush1.bf16.msra.mxu0 0
    %372 = vmatprep.subr.bf16.mxu0 0
    %373 = vmatpush1.bf16.msra.mxu0 0
    %374 = vmatprep.subr.bf16.mxu0 0
    %375 = vmatpush1.bf16.msra.mxu0 0
    %376 = vmatprep.subr.bf16.mxu0 0
    %377 = vmatpush1.bf16.msra.mxu0 %v358
    %378 = vmatprep.subr.bf16.mxu0 0
    %379 = vmatpush1.bf16.msra.mxu0 %v357
    %380 = vmatprep.subr.bf16.mxu0 0
    %381 = vmatpush2.bf16.msra.mxu0 0
    %382 = vmatprep.subr.bf16.mxu0 0
    %383 = vmatpush2.bf16.msra.mxu0 0
    %384 = vmatprep.subr.bf16.mxu0 0
    %385 = vmatpush2.bf16.msra.mxu0 0
    %386 = vmatprep.subr.bf16.mxu0 0
    %387 = vmatpush2.bf16.msra.mxu0 0
    %388 = vmatprep.subr.bf16.mxu0 0
    %389 = vmatpush2.bf16.msra.mxu0 0
    %390 = vmatprep.subr.bf16.mxu0 0
    %391 = vmatpush2.bf16.msra.mxu0 0
    %392 = vmatprep.subr.bf16.mxu0 0
    %393 = vmatpush2.bf16.msra.mxu0 0
    %394 = vmatprep.subr.bf16.mxu0 0
    %395 = vmatpush2.bf16.msra.mxu0 0
    %396 = vmatprep.mubr.bf16.mxu0 0
    %397 = vmatmul.mubr.bf16.gmra.mxu0 %v362
    %v398 = vpop.f32.mrf.mxu0
    %v399 = vadd.f32 0.0, %v398
    %v400 = vpop.f32.mrf.mxu0
    %v401 = vpop.f32.mrf.mxu0
    %v402 = vpop.f32.mrf.mxu0
    %403 = vdwg.mxu0
    %405 = vrot.lane.b32.xlu0 %v237, 32
    %v406 = vpop.permute.xlu0 %405
    %v411 = vunpack.c.l.b16 %v337
    %v412 = vunpack.c.l.b16 %v338
    %v413 = vunpack.c.l.b16 %v339
    %v414 = vunpack.c.l.b16 %v340
    %v415 = vpack.c.b16 %v412, %v411
    %v416 = vpack.c.b16 %v414, %v413
    %v420 = vsel %vm139, %v406, 0
    %422 = vmatprep.subr.bf16.mxu0 0
    %423 = vmatpush1.bf16.msra.mxu0 0
    %424 = vmatprep.subr.bf16.mxu0 0
    %425 = vmatpush1.bf16.msra.mxu0 0
    %426 = vmatprep.subr.bf16.mxu0 0
    %427 = vmatpush1.bf16.msra.mxu0 0
    %428 = vmatprep.subr.bf16.mxu0 0
    %429 = vmatpush1.bf16.msra.mxu0 0
    %430 = vmatprep.subr.bf16.mxu0 0
    %431 = vmatpush1.bf16.msra.mxu0 0
    %432 = vmatprep.subr.bf16.mxu0 0
    %433 = vmatpush1.bf16.msra.mxu0 0
    %434 = vmatprep.subr.bf16.mxu0 0
    %435 = vmatpush1.bf16.msra.mxu0 %v416
    %436 = vmatprep.subr.bf16.mxu0 0
    %437 = vmatpush1.bf16.msra.mxu0 %v415
    %438 = vmatprep.subr.bf16.mxu0 0
    %439 = vmatpush2.bf16.msra.mxu0 0
    %440 = vmatprep.subr.bf16.mxu0 0
    %441 = vmatpush2.bf16.msra.mxu0 0
    %442 = vmatprep.subr.bf16.mxu0 0
    %443 = vmatpush2.bf16.msra.mxu0 0
    %444 = vmatprep.subr.bf16.mxu0 0
    %445 = vmatpush2.bf16.msra.mxu0 0
    %446 = vmatprep.subr.bf16.mxu0 0
    %447 = vmatpush2.bf16.msra.mxu0 0
    %448 = vmatprep.subr.bf16.mxu0 0
    %449 = vmatpush2.bf16.msra.mxu0 0
    %450 = vmatprep.subr.bf16.mxu0 0
    %451 = vmatpush2.bf16.msra.mxu0 0
    %452 = vmatprep.subr.bf16.mxu0 0
    %453 = vmatpush2.bf16.msra.mxu0 0
    %454 = vmatprep.mubr.bf16.mxu0 0
    %455 = vmatmul.mubr.bf16.gmra.mxu0 %v420
    %v456 = vpop.f32.mrf.mxu0
    %v457 = vadd.f32 %v399, %v456
    %v458 = vpop.f32.mrf.mxu0
    %v459 = vpop.f32.mrf.mxu0
    %v460 = vpop.f32.mrf.mxu0
    %461 = vdwg.mxu0
    %v462 = vld [vmem:[%s8] sm:$0x1]
    %v464 = vlaneseq
    %v465 = vshrl.u32 %v464, 7
    %v466 = vsub.s32 0, %v465
    %v467 = vrot.slane %v462, %v466
    %v469 = vadd.f32 %v457, %v467
    %470 = vst.msk [vmem:[#allocation13] sm:$0xff] %vm139, %v469
    // Predicated region
    $region57: #{tpu_custom_call.1} parent=1 // pred_check
      _
    $region58: #{tpu_custom_call.1} parent=1 // pred_check_branch
      %472 = sbr.rel (0) target = $region60
    $region59: #{tpu_custom_call.1} parent=1 // pred_region
      %s474 = ssub.s32 128, 128
      %475 = vsyncadd [#allocation7], %s474
      %s477 = sshll.u32 [#allocation13], 4
      %s478 = int_to_ptr.vmem [resolvable:$true] %s477
      %480 = dma.vmem_to_hbm [thread:$0]  %s478, 128, %s9, [#allocation7]
    $region60: #{tpu_custom_call.1} parent=1 // pred_fallthru
      _
    // Predicated region
    $region61: #{tpu_custom_call.1} parent=1 // pred_check
      _
    $region62: #{tpu_custom_call.1} parent=1 // pred_check_branch
      %482 = sbr.rel (0) target = $region64
    $region63: #{tpu_custom_call.1} parent=1 // pred_region
      %483 = dma.done [#allocation7], 128
    $region64: #{tpu_custom_call.1} parent=1 // pred_fallthru
      _
    %484 = vsyncpa [#allocation6], 1
    %485 = vsyncpa [#allocation9], 1
    %486 = vsyncpa [#allocation12], 1
    %487 = vsyncpa [#allocation7], 1

</llo_original>
